<compile_context>
chip_gen: v5e
topology: v5e:2x2
jax: 0.10.0
libtpu: 0.0.40
codegen_flags: <defaults>
</compile_context>

<pallas_src>
import jax
import jax.numpy as jnp
from jax.experimental import pallas as pl
from jax.experimental.pallas import tpu as pltpu

# Network dims: AuditoryModality(dim) = 3x FC_Reslayer + final Nonact_FClayer.
DIM = [32, 64, 64, 32, 16]
N_LAYERS = 7          # total nn.Linear layers in the chain
F_PAD = 64            # uniform padded feature width (>= max(DIM), mult of 8)
RES_AT = (1, 3, 5)    # layer indices that carry the FC_Reslayer skip-add
TM_CAP = 512          # max rows per batch tile (review item R1)


def _round_up(x, m):
    return (x + m - 1) // m * m


# -----------------------------------------------------------------------------
# Kernel (built by a small factory: tile split + elementwise dtype are static)
# -----------------------------------------------------------------------------
def make_kernel(*, split, half, act_dtype):
    """split: run two interleaved half-tile chains (hide MXU drain).
    act_dtype: dtype of layer outputs / bias add / ReLU / skip add
               (bf16 on v6e/v7x, f32 on v5e and older)."""
    last = N_LAYERS - 1

    def run_chains(hs, w_ref, b_ref):
        # hs: list of (rows, DIM[0]) bf16 activation values (1 or 2 chains).
        for k in range(N_LAYERS):
            is_last = (k == last)
            pref = jnp.float32 if is_last else act_dtype
            # Layer 0 consumes the unpadded 32-feature input -> static row
            # slice of the slab (32 rows is 16-sublane aligned for bf16).
            w = w_ref[0][:DIM[0], :] if k == 0 else w_ref[k]
            b = b_ref[k]
            # Issue all (independent) MXU pushes for this layer first so the
            # scheduler can overlap one chain's epilogue with the other's
            # matmul (review item R7).
            dots = [jnp.dot(h.astype(jnp.bfloat16), w, preferred_element_type=pref)
                    for h in hs]
            nxt = []
            for h, o in zip(hs, dots):
                o = o + b
                if k in RES_AT:
                    o = o + h          # exact skip connection (not folded into W)
                if not is_last:        # final layer = Nonact_FClayer: no ReLU
                    o = jnp.maximum(o, 0.0)
                nxt.append(o)
            hs = nxt
        return hs                      # list of (rows, F_PAD) f32 values

    def kernel(x_ref, w_ref, b_ref, out_ref):
        # x_ref  : (TM, DIM[0])        bf16 activation tile (unpadded features)
        # w_ref  : (7, F_PAD, F_PAD)   bf16 packed weights (resident in VMEM)
        # b_ref  : (7, 1, F_PAD)       act_dtype packed biases (resident)
        # out_ref: (TM, DIM[-1])       f32 final output (useful lanes only)
        if split:
            o0, o1 = run_chains([x_ref[:half], x_ref[pl.ds(half, half)]],
                                w_ref, b_ref)
            out_ref[:half] = o0[:, :DIM[-1]]
            out_ref[pl.ds(half, half)] = o1[:, :DIM[-1]]
        else:
            (o,) = run_chains([x_ref[...]], w_ref, b_ref)
            out_ref[...] = o[:, :DIM[-1]]

    return kernel


# -----------------------------------------------------------------------------
# Host-side packing + tiling policy + wrapper
# -----------------------------------------------------------------------------
def pack_params(params, act_dtype=jnp.float32):
    """params: [w1a,b1a, w1b,b1b, w2a,b2a, w2b,b2b, w3a,b3a, w3b,b3b, w4,b4]
    weights pre-transposed to [in, out], biases [1, out] (f32).
    Returns (w_slab bf16 (7,F_PAD,F_PAD), b_slab act_dtype (7,1,F_PAD)).
    Residuals are NOT folded into the weights (kept exact in-kernel)."""
    ws = list(params[0::2])
    bs = list(params[1::2])
    w_slab = jnp.zeros((N_LAYERS, F_PAD, F_PAD), jnp.float32)
    b_slab = jnp.zeros((N_LAYERS, 1, F_PAD), jnp.float32)
    for k, (w, b) in enumerate(zip(ws, bs)):
        kin, kout = w.shape
        w_slab = w_slab.at[k, :kin, :kout].set(w)
        b_slab = b_slab.at[k, 0, :kout].set(b.reshape(-1))
    return w_slab.astype(jnp.bfloat16), b_slab.astype(act_dtype)


def _choose_tiling(batch, two_cores):
    """(TM, B_full, split):
       - tiles up to TM_CAP rows (amortize ~0.35us/step overhead)       [R1]
       - >= 2 tiles on dual-TC chips so "parallel" shards across cores  [R2]
       - TM = ceil(B/n) rounded (not fixed pow2) -> low padding waste   [R8]
       - TM rounded to 32 when large enough so the tile splits into two
         sublane-aligned half-chains (works for f32 and packed bf16)    [R7]"""
    b_pad = _round_up(max(batch, 8), 8)
    n_min = 2 if (two_cores and b_pad >= 16) else 1
    n = max(n_min, -(-b_pad // TM_CAP))
    tm = -(-b_pad // n)
    if tm >= 32:
        tm = _round_up(tm, 32)
        split = True
    else:
        # keep bf16 sublane alignment when the block is smaller than the array
        tm = _round_up(tm, 16 if n > 1 else 8)
        split = False
    b_full = _round_up(b_pad, tm)
    return tm, b_full, split


def auditory_modality(x, w_slab, b_slab, *, act_dtype=None):
    """x: [B, DIM[0]] f32. Returns [B, DIM[-1]] f32."""
    B, in_dim = x.shape
    assert in_dim == DIM[0]
    out_dim = DIM[-1]
    if act_dtype is None:
        act_dtype = b_slab.dtype

    kind = jax.devices()[0].device_kind.lower()
    two_cores = "v7" in kind                      # megacore sharding target
    TM, B_full, split = _choose_tiling(B, two_cores)
    half = TM // 2

    # Row-pad only; features stay unpadded and go in as bf16 (review item R3).
    x_pad = jnp.zeros((B_full, in_dim), jnp.bfloat16).at[:B].set(
        x.astype(jnp.bfloat16))

    grid = (B_full // TM,)
    flops = 2 * B_full * (DIM[0] * F_PAD + (N_LAYERS - 1) * F_PAD * F_PAD)
    bytes_accessed = (int(x_pad.size) * 2 + int(w_slab.size) * 2
                      + int(b_slab.size) * int(b_slab.dtype.itemsize)
                      + B_full * out_dim * 4)

    kernel = make_kernel(split=split, half=half, act_dtype=act_dtype)

    out = pl.pallas_call(
        kernel,
        out_shape=jax.ShapeDtypeStruct((B_full, out_dim), jnp.float32),
        grid=grid,
        in_specs=[
            pl.BlockSpec((TM, in_dim), lambda i: (i, 0)),
            # Constant index_map -> weight/bias slabs stay resident in VMEM.
            pl.BlockSpec((N_LAYERS, F_PAD, F_PAD), lambda i: (0, 0, 0)),
            pl.BlockSpec((N_LAYERS, 1, F_PAD), lambda i: (0, 0, 0)),
        ],
        out_specs=pl.BlockSpec((TM, out_dim), lambda i: (i, 0)),
        compiler_params=pltpu.CompilerParams(
            dimension_semantics=("parallel",)),
        cost_estimate=pl.CostEstimate(
            flops=flops, transcendentals=0, bytes_accessed=bytes_accessed),
    )(x_pad, w_slab, b_slab)
    return out[:B]


# -----------------------------------------------------------------------------
# Parameter init + references
# -----------------------------------------------------------------------------
def init_params(key, dim):
    """Weights pre-transposed to [in, out]; biases [1, out] (f32)."""
    shapes = [
        (dim[0], dim[1]), (dim[1], dim[1]),   # fc_res1
        (dim[1], dim[2]), (dim[2], dim[2]),   # fc_res2
        (dim[2], dim[3]), (dim[3], dim[3]),   # fc_res3
        (dim[3], dim[4]),                     # fc_res4 (Nonact_FClayer)
    ]
    params = []
    for (fan_in, fan_out) in shapes:
        key, kw, kb = jax.random.split(key, 3)
        bound = 1.0 / jnp.sqrt(fan_in)
        w = jax.random.uniform(kw, (fan_in, fan_out), jnp.float32, -bound, bound)
        b = jax.random.uniform(kb, (1, fan_out), jnp.float32, -bound, bound)
        params += [w, b]
    return params


def reference_forward(x, params):
    """Original module math, full f32 (unpadded)."""
    (w1a, b1a, w1b, b1b, w2a, b2a, w2b, b2b,
     w3a, b3a, w3b, b3b, w4, b4) = params

    def block(x, w1, b1, w2, b2):
        h = jnp.maximum(x @ w1 + b1, 0.0)
        h = h + (h @ w2 + b2)
        return jnp.maximum(h, 0.0)

    x = block(x, w1a, b1a, w1b, b1b)
    x = block(x, w2a, b2a, w2b, b2b)
    x = block(x, w3a, b3a, w3b, b3b)
    return x @ w4 + b4          # Nonact_FClayer: plain Linear, no activation


def packed_reference(x, w_slab, b_slab, act_dtype):
    """Pure-JAX mirror of the kernel numerics (same slabs, same dtypes)."""
    h = x.astype(jnp.bfloat16)
    for k in range(N_LAYERS):
        is_last = (k == N_LAYERS - 1)
        pref = jnp.float32 if is_last else act_dtype
        w = w_slab[0][:DIM[0], :] if k == 0 else w_slab[k]
        o = jnp.dot(h.astype(jnp.bfloat16), w, preferred_element_type=pref)
        o = o + b_slab[k]
        if k in RES_AT:
            o = o + h
        h = o if is_last else jnp.maximum(o, 0.0)
    return h[:, :DIM[-1]]


# -----------------------------------------------------------------------------
if __name__ == "__main__":
    key = jax.random.PRNGKey(0)
    key, kx1, kx2 = jax.random.split(key, 3)
    params = init_params(key, DIM)

    # bf16 elementwise path only where the VPU supports it (v6e / v7x).
    kind = jax.devices()[0].device_kind.lower()
    act_dtype = jnp.bfloat16 if ("v6" in kind or "v7" in kind) else jnp.float32
    w_slab, b_slab = pack_params(params, act_dtype)

    ok = True
    # Case 1: small batch (single tile, single chain).
    # Case 2: larger batch (multi-tile grid + dual half-tile chains).
    for B, kx in ((8, kx1), (600, kx2)):
        x = jax.random.normal(kx, (B, DIM[0]), jnp.float32)
        out = jax.block_until_ready(
            auditory_modality(x, w_slab, b_slab, act_dtype=act_dtype))
        assert out.shape == (B, DIM[-1])

        # Tight-ish check: kernel vs identical-precision pure-JAX math
        # (catches structural bugs: layer order, residuals, slicing, tiling).
        ref_packed = packed_reference(x, w_slab, b_slab, act_dtype)
        ok &= bool(jnp.allclose(out, ref_packed, atol=2e-2, rtol=2e-2))

        # Semantics check vs the original f32 module math; tolerance = bf16
        # weight/activation rounding through the 7-layer chain.
        ref_f32 = reference_forward(x, params)
        ok &= bool(jnp.allclose(out, ref_f32, atol=6e-2, rtol=6e-2))

    assert ok
    print("KERNEL_OK")
</pallas_src>

<mosaic_0001>
module attributes {stable_mosaic.version = 11 : i64} {
  func.func @kernel(%arg0: i32, %arg1: memref<8x32xbf16, #tpu.memory_space<vmem>>, %arg2: memref<7x64x64xbf16, #tpu.memory_space<vmem>>, %arg3: memref<7x1x64xf32, #tpu.memory_space<vmem>>, %arg4: memref<8x16xf32, #tpu.memory_space<vmem>>) attributes {dimension_semantics = [#tpu.dimension_semantics<parallel>], iteration_bounds = array<i64: 1>, scalar_prefetch = 0 : i64, scratch_operands = 0 : i64, tpu.core_type = #tpu.core_type<tc>, window_params = [{transform_indices = @transform_0, window_bounds = array<i64: 8, 32>}, {pipeline_mode = #tpu.pipeline_mode<synchronous>, transform_indices = @transform_1, window_bounds = array<i64: 7, 64, 64>}, {pipeline_mode = #tpu.pipeline_mode<synchronous>, transform_indices = @transform_2, window_bounds = array<i64: 7, 1, 64>}, {transform_indices = @transform_3, window_bounds = array<i64: 8, 16>}]} {
    %c0 = arith.constant 0 : index
    %c0_0 = arith.constant 0 : index
    %0 = vector.load %arg1[%c0, %c0_0] : memref<8x32xbf16, #tpu.memory_space<vmem>>, vector<8x32xbf16>
    %c0_1 = arith.constant 0 : index
    %c0_2 = arith.constant 0 : index
    %c0_3 = arith.constant 0 : index
    %1 = vector.load %arg2[%c0_1, %c0_2, %c0_3] : memref<7x64x64xbf16, #tpu.memory_space<vmem>>, vector<1x64x64xbf16>
    %2 = vector.shape_cast %1 : vector<1x64x64xbf16> to vector<64x64xbf16>
    %3 = vector.extract_strided_slice %2 {offsets = [0, 0], sizes = [32, 64], strides = [1, 1]} : vector<64x64xbf16> to vector<32x64xbf16>
    %c0_4 = arith.constant 0 : index
    %c0_5 = arith.constant 0 : index
    %c0_6 = arith.constant 0 : index
    %4 = vector.load %arg3[%c0_4, %c0_5, %c0_6] : memref<7x1x64xf32, #tpu.memory_space<vmem>>, vector<1x1x64xf32>
    %5 = vector.shape_cast %4 : vector<1x1x64xf32> to vector<1x64xf32>
    %cst = arith.constant dense<0.000000e+00> : vector<8x64xf32>
    %6 = tpu.matmul %0, %3, %cst {dimension_numbers = #tpu.dot_dimension_numbers<[1], [0], [0], [1], [0, 0, 1, 1], [], []>} : vector<8x32xbf16>, vector<32x64xbf16>, vector<8x64xf32> -> vector<8x64xf32>
    %7 = vector.broadcast %5 : vector<1x64xf32> to vector<8x64xf32>
    %8 = arith.addf %6, %7 : vector<8x64xf32>
    %cst_7 = arith.constant 0.000000e+00 : f32
    %9 = vector.broadcast %cst_7 : f32 to vector<8x64xf32>
    %10 = arith.maximumf %8, %9 : vector<8x64xf32>
    %c1 = arith.constant 1 : index
    %c0_8 = arith.constant 0 : index
    %c0_9 = arith.constant 0 : index
    %11 = vector.load %arg2[%c1, %c0_8, %c0_9] : memref<7x64x64xbf16, #tpu.memory_space<vmem>>, vector<1x64x64xbf16>
    %12 = vector.shape_cast %11 : vector<1x64x64xbf16> to vector<64x64xbf16>
    %c1_10 = arith.constant 1 : index
    %c0_11 = arith.constant 0 : index
    %c0_12 = arith.constant 0 : index
    %13 = vector.load %arg3[%c1_10, %c0_11, %c0_12] : memref<7x1x64xf32, #tpu.memory_space<vmem>>, vector<1x1x64xf32>
    %14 = vector.shape_cast %13 : vector<1x1x64xf32> to vector<1x64xf32>
    %15 = arith.truncf %10 : vector<8x64xf32> to vector<8x64xbf16>
    %cst_13 = arith.constant dense<0.000000e+00> : vector<8x64xf32>
    %16 = tpu.matmul %15, %12, %cst_13 {dimension_numbers = #tpu.dot_dimension_numbers<[1], [0], [0], [1], [0, 0, 1, 1], [], []>} : vector<8x64xbf16>, vector<64x64xbf16>, vector<8x64xf32> -> vector<8x64xf32>
    %17 = vector.broadcast %14 : vector<1x64xf32> to vector<8x64xf32>
    %18 = arith.addf %16, %17 : vector<8x64xf32>
    %19 = arith.addf %18, %10 : vector<8x64xf32>
    %cst_14 = arith.constant 0.000000e+00 : f32
    %20 = vector.broadcast %cst_14 : f32 to vector<8x64xf32>
    %21 = arith.maximumf %19, %20 : vector<8x64xf32>
    %c2 = arith.constant 2 : index
    %c0_15 = arith.constant 0 : index
    %c0_16 = arith.constant 0 : index
    %22 = vector.load %arg2[%c2, %c0_15, %c0_16] : memref<7x64x64xbf16, #tpu.memory_space<vmem>>, vector<1x64x64xbf16>
    %23 = vector.shape_cast %22 : vector<1x64x64xbf16> to vector<64x64xbf16>
    %c2_17 = arith.constant 2 : index
    %c0_18 = arith.constant 0 : index
    %c0_19 = arith.constant 0 : index
    %24 = vector.load %arg3[%c2_17, %c0_18, %c0_19] : memref<7x1x64xf32, #tpu.memory_space<vmem>>, vector<1x1x64xf32>
    %25 = vector.shape_cast %24 : vector<1x1x64xf32> to vector<1x64xf32>
    %26 = arith.truncf %21 : vector<8x64xf32> to vector<8x64xbf16>
    %cst_20 = arith.constant dense<0.000000e+00> : vector<8x64xf32>
    %27 = tpu.matmul %26, %23, %cst_20 {dimension_numbers = #tpu.dot_dimension_numbers<[1], [0], [0], [1], [0, 0, 1, 1], [], []>} : vector<8x64xbf16>, vector<64x64xbf16>, vector<8x64xf32> -> vector<8x64xf32>
    %28 = vector.broadcast %25 : vector<1x64xf32> to vector<8x64xf32>
    %29 = arith.addf %27, %28 : vector<8x64xf32>
    %cst_21 = arith.constant 0.000000e+00 : f32
    %30 = vector.broadcast %cst_21 : f32 to vector<8x64xf32>
    %31 = arith.maximumf %29, %30 : vector<8x64xf32>
    %c3 = arith.constant 3 : index
    %c0_22 = arith.constant 0 : index
    %c0_23 = arith.constant 0 : index
    %32 = vector.load %arg2[%c3, %c0_22, %c0_23] : memref<7x64x64xbf16, #tpu.memory_space<vmem>>, vector<1x64x64xbf16>
    %33 = vector.shape_cast %32 : vector<1x64x64xbf16> to vector<64x64xbf16>
    %c3_24 = arith.constant 3 : index
    %c0_25 = arith.constant 0 : index
    %c0_26 = arith.constant 0 : index
    %34 = vector.load %arg3[%c3_24, %c0_25, %c0_26] : memref<7x1x64xf32, #tpu.memory_space<vmem>>, vector<1x1x64xf32>
    %35 = vector.shape_cast %34 : vector<1x1x64xf32> to vector<1x64xf32>
    %36 = arith.truncf %31 : vector<8x64xf32> to vector<8x64xbf16>
    %cst_27 = arith.constant dense<0.000000e+00> : vector<8x64xf32>
    %37 = tpu.matmul %36, %33, %cst_27 {dimension_numbers = #tpu.dot_dimension_numbers<[1], [0], [0], [1], [0, 0, 1, 1], [], []>} : vector<8x64xbf16>, vector<64x64xbf16>, vector<8x64xf32> -> vector<8x64xf32>
    %38 = vector.broadcast %35 : vector<1x64xf32> to vector<8x64xf32>
    %39 = arith.addf %37, %38 : vector<8x64xf32>
    %40 = arith.addf %39, %31 : vector<8x64xf32>
    %cst_28 = arith.constant 0.000000e+00 : f32
    %41 = vector.broadcast %cst_28 : f32 to vector<8x64xf32>
    %42 = arith.maximumf %40, %41 : vector<8x64xf32>
    %c4 = arith.constant 4 : index
    %c0_29 = arith.constant 0 : index
    %c0_30 = arith.constant 0 : index
    %43 = vector.load %arg2[%c4, %c0_29, %c0_30] : memref<7x64x64xbf16, #tpu.memory_space<vmem>>, vector<1x64x64xbf16>
    %44 = vector.shape_cast %43 : vector<1x64x64xbf16> to vector<64x64xbf16>
    %c4_31 = arith.constant 4 : index
    %c0_32 = arith.constant 0 : index
    %c0_33 = arith.constant 0 : index
    %45 = vector.load %arg3[%c4_31, %c0_32, %c0_33] : memref<7x1x64xf32, #tpu.memory_space<vmem>>, vector<1x1x64xf32>
    %46 = vector.shape_cast %45 : vector<1x1x64xf32> to vector<1x64xf32>
    %47 = arith.truncf %42 : vector<8x64xf32> to vector<8x64xbf16>
    %cst_34 = arith.constant dense<0.000000e+00> : vector<8x64xf32>
    %48 = tpu.matmul %47, %44, %cst_34 {dimension_numbers = #tpu.dot_dimension_numbers<[1], [0], [0], [1], [0, 0, 1, 1], [], []>} : vector<8x64xbf16>, vector<64x64xbf16>, vector<8x64xf32> -> vector<8x64xf32>
    %49 = vector.broadcast %46 : vector<1x64xf32> to vector<8x64xf32>
    %50 = arith.addf %48, %49 : vector<8x64xf32>
    %cst_35 = arith.constant 0.000000e+00 : f32
    %51 = vector.broadcast %cst_35 : f32 to vector<8x64xf32>
    %52 = arith.maximumf %50, %51 : vector<8x64xf32>
    %c5 = arith.constant 5 : index
    %c0_36 = arith.constant 0 : index
    %c0_37 = arith.constant 0 : index
    %53 = vector.load %arg2[%c5, %c0_36, %c0_37] : memref<7x64x64xbf16, #tpu.memory_space<vmem>>, vector<1x64x64xbf16>
    %54 = vector.shape_cast %53 : vector<1x64x64xbf16> to vector<64x64xbf16>
    %c5_38 = arith.constant 5 : index
    %c0_39 = arith.constant 0 : index
    %c0_40 = arith.constant 0 : index
    %55 = vector.load %arg3[%c5_38, %c0_39, %c0_40] : memref<7x1x64xf32, #tpu.memory_space<vmem>>, vector<1x1x64xf32>
    %56 = vector.shape_cast %55 : vector<1x1x64xf32> to vector<1x64xf32>
    %57 = arith.truncf %52 : vector<8x64xf32> to vector<8x64xbf16>
    %cst_41 = arith.constant dense<0.000000e+00> : vector<8x64xf32>
    %58 = tpu.matmul %57, %54, %cst_41 {dimension_numbers = #tpu.dot_dimension_numbers<[1], [0], [0], [1], [0, 0, 1, 1], [], []>} : vector<8x64xbf16>, vector<64x64xbf16>, vector<8x64xf32> -> vector<8x64xf32>
    %59 = vector.broadcast %56 : vector<1x64xf32> to vector<8x64xf32>
    %60 = arith.addf %58, %59 : vector<8x64xf32>
    %61 = arith.addf %60, %52 : vector<8x64xf32>
    %cst_42 = arith.constant 0.000000e+00 : f32
    %62 = vector.broadcast %cst_42 : f32 to vector<8x64xf32>
    %63 = arith.maximumf %61, %62 : vector<8x64xf32>
    %c6 = arith.constant 6 : index
    %c0_43 = arith.constant 0 : index
    %c0_44 = arith.constant 0 : index
    %64 = vector.load %arg2[%c6, %c0_43, %c0_44] : memref<7x64x64xbf16, #tpu.memory_space<vmem>>, vector<1x64x64xbf16>
    %65 = vector.shape_cast %64 : vector<1x64x64xbf16> to vector<64x64xbf16>
    %c6_45 = arith.constant 6 : index
    %c0_46 = arith.constant 0 : index
    %c0_47 = arith.constant 0 : index
    %66 = vector.load %arg3[%c6_45, %c0_46, %c0_47] : memref<7x1x64xf32, #tpu.memory_space<vmem>>, vector<1x1x64xf32>
    %67 = vector.shape_cast %66 : vector<1x1x64xf32> to vector<1x64xf32>
    %68 = arith.truncf %63 : vector<8x64xf32> to vector<8x64xbf16>
    %cst_48 = arith.constant dense<0.000000e+00> : vector<8x64xf32>
    %69 = tpu.matmul %68, %65, %cst_48 {dimension_numbers = #tpu.dot_dimension_numbers<[1], [0], [0], [1], [0, 0, 1, 1], [], []>} : vector<8x64xbf16>, vector<64x64xbf16>, vector<8x64xf32> -> vector<8x64xf32>
    %70 = vector.broadcast %67 : vector<1x64xf32> to vector<8x64xf32>
    %71 = arith.addf %69, %70 : vector<8x64xf32>
    %72 = vector.extract_strided_slice %71 {offsets = [0, 0], sizes = [8, 16], strides = [1, 1]} : vector<8x64xf32> to vector<8x16xf32>
    %c0_49 = arith.constant 0 : index
    %c0_50 = arith.constant 0 : index
    %73 = vector.load %arg4[%c0_49, %c0_50] : memref<8x16xf32, #tpu.memory_space<vmem>>, vector<8x16xf32>
    tpu.vector_store %arg4[%c0_49, %c0_50], %72 {strides = array<i32>} : memref<8x16xf32, #tpu.memory_space<vmem>>, vector<8x16xf32>,
    return
  }
  func.func @transform_0(%arg0: i32) -> (i32, i32) {
    %c0_i32 = arith.constant 0 : i32
    %c0_i32_0 = arith.constant 0 : i32
    return %arg0, %c0_i32 : i32, i32
  }
  func.func @transform_1(%arg0: i32) -> (i32, i32, i32) {
    %c0_i32 = arith.constant 0 : i32
    %c0_i32_0 = arith.constant 0 : i32
    %c0_i32_1 = arith.constant 0 : i32
    %c0_i32_2 = arith.constant 0 : i32
    return %c0_i32, %c0_i32_0, %c0_i32_1 : i32, i32, i32
  }
  func.func @transform_2(%arg0: i32) -> (i32, i32, i32) {
    %c0_i32 = arith.constant 0 : i32
    %c0_i32_0 = arith.constant 0 : i32
    %c0_i32_1 = arith.constant 0 : i32
    %c0_i32_2 = arith.constant 0 : i32
    return %c0_i32, %c0_i32_0, %c0_i32_1 : i32, i32, i32
  }
  func.func @transform_3(%arg0: i32) -> (i32, i32) {
    %c0_i32 = arith.constant 0 : i32
    %c0_i32_0 = arith.constant 0 : i32
    return %arg0, %c0_i32 : i32, i32
  }
}

</mosaic_0001>

<llo_original>
// kernel: tpu_custom_call.1
$region0: #{tpu_custom_call.1}
  #allocation0 [shape = 'u32[]', space=smem, size = 0x4, offset = 0x4, fixed_abs, tag = 'smem constant byte address 0x4 - core index']
  #allocation1 [shape = 'u32[72,128]{1,0:T(1,128)}', space=vmem, size = 0x9000, scoped, tag = 'internal scratch']
  %s0 = inlined_call_operand.hbm [shape: bf16[8,32], index: 0, kind: input, shape index: {}]
  %s1 = inlined_call_operand.hbm [shape: bf16[7,64,64], index: 1, kind: input, shape index: {}]
  %s2 = inlined_call_operand.hbm [shape: f32[7,1,64], index: 2, kind: input, shape index: {}]
  %s3 = inlined_call_operand.hbm [shape: f32[8,16], index: 3, kind: output, shape index: {}]
  %s4 = sld [smem:[#allocation0]]
  $region34: #{tpu_custom_call.1} parent=0
    _
  %s6 = ssub.s32 1, %s4
  %s7 = scalar_select 0, %s6, %s4
  $region1: #{tpu_custom_call.1} parent=0
    #allocation2 [shape = 'u8[2048]{0}', space=vmem, size = 0x800, scoped, tag = 'input window, operand 0, single buffered']
    #allocation3 [shape = 's32[1]{0}', space=sflag, size = 0x4, scoped, tag = 'scoped memory for tpu_custom_call.1']
    #allocation4 [shape = 's32[1]{0}', space=sflag, size = 0x4, scoped, tag = 'scoped memory for tpu_custom_call.1']
    #allocation5 [shape = 'u8[114688]{0}', space=vmem, size = 0x1c000, scoped, tag = 'input window, operand 1, single buffered']
    #allocation6 [shape = 's32[1]{0}', space=sflag, size = 0x4, scoped, tag = 'scoped memory for tpu_custom_call.1']
    #allocation7 [shape = 'u8[3584]{0}', space=vmem, size = 0x1000, scoped, tag = 'input window, operand 2, single buffered']
    #allocation8 [shape = 'u8[4096]{0}', space=vmem, size = 0x1000, scoped, tag = 'output window, operand 0, single buffered']
    %8 = vsyncpa [#allocation3], 0
    %9 = vsyncpa [#allocation6], 0
    %10 = vsyncpa [#allocation4], 0
    // Predicated region
    $region2: #{tpu_custom_call.1} parent=1 // pred_check
      _
    $region3: #{tpu_custom_call.1} parent=1 // pred_check_branch
      %12 = sbr.rel (0) target = $region5
    $region4: #{tpu_custom_call.1} parent=1 // pred_region
      %14 = vsyncadd [#allocation3], 0
      %s16 = sshll.u32 %s0, 4
      %s17 = int_to_ptr.hbm [resolvable:$true] %s16
      %s18 = sshll.u32 [#allocation2], 4
      %s19 = int_to_ptr.vmem [resolvable:$true] %s18
      %21 = dma.hbm_to_vmem [thread:$0]  %s17, 64, %s19, [#allocation3]
    $region5: #{tpu_custom_call.1} parent=1 // pred_fallthru
      _
    // Predicated region
    $region6: #{tpu_custom_call.1} parent=1 // pred_check
      _
    $region7: #{tpu_custom_call.1} parent=1 // pred_check_branch
      %23 = sbr.rel (0) target = $region9
    $region8: #{tpu_custom_call.1} parent=1 // pred_region
      %25 = vsyncadd [#allocation6], 0
      %s26 = sshll.u32 %s1, 4
      %s27 = int_to_ptr.hbm [resolvable:$true] %s26
      %s28 = sshll.u32 [#allocation5], 4
      %s29 = int_to_ptr.vmem [resolvable:$true] %s28
      %34 = dma.hbm_to_vmem [thread:$0]  %s27, 3584, %s29, [#allocation6], 64, 64, 4
    $region9: #{tpu_custom_call.1} parent=1 // pred_fallthru
      _
    // Predicated region
    $region10: #{tpu_custom_call.1} parent=1 // pred_check
      _
    $region11: #{tpu_custom_call.1} parent=1 // pred_check_branch
      %36 = sbr.rel (0) target = $region13
    $region12: #{tpu_custom_call.1} parent=1 // pred_region
      %38 = vsyncadd [#allocation6], 0
      %s39 = sshll.u32 %s2, 4
      %s40 = int_to_ptr.hbm [resolvable:$true] %s39
      %s41 = sshll.u32 [#allocation7], 4
      %s42 = int_to_ptr.vmem [resolvable:$true] %s41
      %47 = dma.hbm_to_vmem [thread:$0]  %s40, 112, %s42, [#allocation6], 16, 16, 1
    $region13: #{tpu_custom_call.1} parent=1 // pred_fallthru
      _
    // Predicated region
    $region14: #{tpu_custom_call.1} parent=1 // pred_check
      _
    $region15: #{tpu_custom_call.1} parent=1 // pred_check_branch
      %49 = sbr.rel (0) target = $region17
    $region16: #{tpu_custom_call.1} parent=1 // pred_region
      %51 = dma.done [#allocation3], 64
    $region17: #{tpu_custom_call.1} parent=1 // pred_fallthru
      _
    // Predicated region
    $region18: #{tpu_custom_call.1} parent=1 // pred_check
      _
    $region19: #{tpu_custom_call.1} parent=1 // pred_check_branch
      %53 = sbr.rel (0) target = $region21
    $region20: #{tpu_custom_call.1} parent=1 // pred_region
      %55 = dma.done [#allocation6], 3584
    $region21: #{tpu_custom_call.1} parent=1 // pred_fallthru
      _
    // Predicated region
    $region22: #{tpu_custom_call.1} parent=1 // pred_check
      _
    $region23: #{tpu_custom_call.1} parent=1 // pred_check_branch
      %57 = sbr.rel (0) target = $region25
    $region24: #{tpu_custom_call.1} parent=1 // pred_region
      %59 = dma.done [#allocation6], 112
    $region25: #{tpu_custom_call.1} parent=1 // pred_fallthru
      _
    %v61 = vld [vmem:[#allocation2] sm:$0xf]
    %v62 = vld [vmem:[#allocation5] sm:$0xf]
    %v63 = vld [vmem:[#allocation5 + $0x4] sm:$0xf]
    %v64 = vld [vmem:[#allocation5 + $0x8] sm:$0xf]
    %v65 = vld [vmem:[#allocation5 + $0xc] sm:$0xf]
    %v66 = vld [vmem:[#allocation7] sm:$0x1]
    %v68 = vperm.slane %v66, 0
    %v74 = vunpack.c.l.b16 %v62
    %v75 = vunpack.c.l.b16 %v63
    %v76 = vunpack.c.l.b16 %v64
    %v77 = vunpack.c.l.b16 %v65
    %v78 = vpack.c.b16 %v75, %v74
    %v79 = vpack.c.b16 %v77, %v76
    %vm82 = vcmask 261120
    %v84 = vsel %vm82, %v61, 0
    %86 = vmatpush.bf16.msra.mxu0 0
    %87 = vmatpush.bf16.msra.mxu0 0
    %88 = vmatpush.bf16.msra.mxu0 0
    %89 = vmatpush.bf16.msra.mxu0 0
    %90 = vmatpush.bf16.msra.mxu0 0
    %91 = vmatpush.bf16.msra.mxu0 0
    %92 = vmatpush.bf16.msra.mxu0 %v79
    %93 = vmatpush.bf16.msra.mxu0 %v78
    %94 = vmatmul.bf16.gmra.mxu0 %v84
    %v95 = vpop.f32.mrf.mxu0
    %v96 = vadd.f32 %v68, %v95
    %v97 = vpop.f32.mrf.mxu0
    %98 = vdwg.mxu0
    %v99 = vmax.f32 %v96, 0.0
    %s100 = scalar_lea.vmem [#allocation5], 32
    %v101 = vld [vmem:[%s100] sm:$0xf]
    %v102 = vld [vmem:[%s100 + $0x4] sm:$0xf]
    %v103 = vld [vmem:[%s100 + $0x8] sm:$0xf]
    %v104 = vld [vmem:[%s100 + $0xc] sm:$0xf]
    %v105 = vld [vmem:[%s100 + $0x10] sm:$0xf]
    %v106 = vld [vmem:[%s100 + $0x14] sm:$0xf]
    %v107 = vld [vmem:[%s100 + $0x18] sm:$0xf]
    %v108 = vld [vmem:[%s100 + $0x1c] sm:$0xf]
    %s109 = scalar_lea.vmem [#allocation7], 1
    %v110 = vld [vmem:[%s109] sm:$0x1]
    %v111 = vpack.c.bf16 %v99, %v99
    %v113 = vperm.slane %v110, 0
    %v123 = vunpack.c.l.b16 %v101
    %v124 = vunpack.c.l.b16 %v102
    %v125 = vunpack.c.l.b16 %v103
    %v126 = vunpack.c.l.b16 %v104
    %v127 = vunpack.c.l.b16 %v105
    %v128 = vunpack.c.l.b16 %v106
    %v129 = vunpack.c.l.b16 %v107
    %v130 = vunpack.c.l.b16 %v108
    %v131 = vpack.c.b16 %v124, %v123
    %v132 = vpack.c.b16 %v126, %v125
    %v133 = vpack.c.b16 %v128, %v127
    %v134 = vpack.c.b16 %v130, %v129
    %vm139 = vcmask 523264
    %v141 = vsel %vm139, %v111, 0
    %143 = vmatpush.bf16.msra.mxu0 0
    %144 = vmatpush.bf16.msra.mxu0 0
    %145 = vmatpush.bf16.msra.mxu0 0
    %146 = vmatpush.bf16.msra.mxu0 0
    %147 = vmatpush.bf16.msra.mxu0 %v134
    %148 = vmatpush.bf16.msra.mxu0 %v133
    %149 = vmatpush.bf16.msra.mxu0 %v132
    %150 = vmatpush.bf16.msra.mxu0 %v131
    %151 = vmatmul.bf16.gmra.mxu0 %v141
    %v152 = vpop.f32.mrf.mxu0
    %v153 = vadd.f32 %v113, %v152
    %v154 = vpop.f32.mrf.mxu0
    %155 = vdwg.mxu0
    %v156 = vadd.f32 %v153, %v99
    %v157 = vmax.f32 %v156, 0.0
    %s158 = scalar_lea.vmem [#allocation5], 64
    %v159 = vld [vmem:[%s158] sm:$0xf]
    %v160 = vld [vmem:[%s158 + $0x4] sm:$0xf]
    %v161 = vld [vmem:[%s158 + $0x8] sm:$0xf]
    %v162 = vld [vmem:[%s158 + $0xc] sm:$0xf]
    %v163 = vld [vmem:[%s158 + $0x10] sm:$0xf]
    %v164 = vld [vmem:[%s158 + $0x14] sm:$0xf]
    %v165 = vld [vmem:[%s158 + $0x18] sm:$0xf]
    %v166 = vld [vmem:[%s158 + $0x1c] sm:$0xf]
    %s167 = scalar_lea.vmem [#allocation7], 2
    %v168 = vld [vmem:[%s167] sm:$0x1]
    %v169 = vpack.c.bf16 %v157, %v157
    %v171 = vperm.slane %v168, 0
    %v181 = vunpack.c.l.b16 %v159
    %v182 = vunpack.c.l.b16 %v160
    %v183 = vunpack.c.l.b16 %v161
    %v184 = vunpack.c.l.b16 %v162
    %v185 = vunpack.c.l.b16 %v163
    %v186 = vunpack.c.l.b16 %v164
    %v187 = vunpack.c.l.b16 %v165
    %v188 = vunpack.c.l.b16 %v166
    %v189 = vpack.c.b16 %v182, %v181
    %v190 = vpack.c.b16 %v184, %v183
    %v191 = vpack.c.b16 %v186, %v185
    %v192 = vpack.c.b16 %v188, %v187
    %v198 = vsel %vm139, %v169, 0
    %200 = vmatpush.bf16.msra.mxu0 0
    %201 = vmatpush.bf16.msra.mxu0 0
    %202 = vmatpush.bf16.msra.mxu0 0
    %203 = vmatpush.bf16.msra.mxu0 0
    %204 = vmatpush.bf16.msra.mxu0 %v192
    %205 = vmatpush.bf16.msra.mxu0 %v191
    %206 = vmatpush.bf16.msra.mxu0 %v190
    %207 = vmatpush.bf16.msra.mxu0 %v189
    %208 = vmatmul.bf16.gmra.mxu0 %v198
    %v209 = vpop.f32.mrf.mxu0
    %v210 = vadd.f32 %v171, %v209
    %v211 = vpop.f32.mrf.mxu0
    %212 = vdwg.mxu0
    %v213 = vmax.f32 %v210, 0.0
    %s214 = scalar_lea.vmem [#allocation5], 96
    %v215 = vld [vmem:[%s214] sm:$0xf]
    %v216 = vld [vmem:[%s214 + $0x4] sm:$0xf]
    %v217 = vld [vmem:[%s214 + $0x8] sm:$0xf]
    %v218 = vld [vmem:[%s214 + $0xc] sm:$0xf]
    %v219 = vld [vmem:[%s214 + $0x10] sm:$0xf]
    %v220 = vld [vmem:[%s214 + $0x14] sm:$0xf]
    %v221 = vld [vmem:[%s214 + $0x18] sm:$0xf]
    %v222 = vld [vmem:[%s214 + $0x1c] sm:$0xf]
    %s223 = scalar_lea.vmem [#allocation7], 3
    %v224 = vld [vmem:[%s223] sm:$0x1]
    %v225 = vpack.c.bf16 %v213, %v213
    %v227 = vperm.slane %v224, 0
    %v237 = vunpack.c.l.b16 %v215
    %v238 = vunpack.c.l.b16 %v216
    %v239 = vunpack.c.l.b16 %v217
    %v240 = vunpack.c.l.b16 %v218
    %v241 = vunpack.c.l.b16 %v219
    %v242 = vunpack.c.l.b16 %v220
    %v243 = vunpack.c.l.b16 %v221
    %v244 = vunpack.c.l.b16 %v222
    %v245 = vpack.c.b16 %v238, %v237
    %v246 = vpack.c.b16 %v240, %v239
    %v247 = vpack.c.b16 %v242, %v241
    %v248 = vpack.c.b16 %v244, %v243
    %v254 = vsel %vm139, %v225, 0
    %256 = vmatpush.bf16.msra.mxu0 0
    %257 = vmatpush.bf16.msra.mxu0 0
    %258 = vmatpush.bf16.msra.mxu0 0
    %259 = vmatpush.bf16.msra.mxu0 0
    %260 = vmatpush.bf16.msra.mxu0 %v248
    %261 = vmatpush.bf16.msra.mxu0 %v247
    %262 = vmatpush.bf16.msra.mxu0 %v246
    %263 = vmatpush.bf16.msra.mxu0 %v245
    %264 = vmatmul.bf16.gmra.mxu0 %v254
    %v265 = vpop.f32.mrf.mxu0
    %v266 = vadd.f32 %v227, %v265
    %v267 = vpop.f32.mrf.mxu0
    %268 = vdwg.mxu0
    %v269 = vadd.f32 %v266, %v213
    %v270 = vmax.f32 %v269, 0.0
    %s271 = scalar_lea.vmem [#allocation5], 128
    %v272 = vld [vmem:[%s271] sm:$0xf]
    %v273 = vld [vmem:[%s271 + $0x4] sm:$0xf]
    %v274 = vld [vmem:[%s271 + $0x8] sm:$0xf]
    %v275 = vld [vmem:[%s271 + $0xc] sm:$0xf]
    %v276 = vld [vmem:[%s271 + $0x10] sm:$0xf]
    %v277 = vld [vmem:[%s271 + $0x14] sm:$0xf]
    %v278 = vld [vmem:[%s271 + $0x18] sm:$0xf]
    %v279 = vld [vmem:[%s271 + $0x1c] sm:$0xf]
    %s280 = scalar_lea.vmem [#allocation7], 4
    %v281 = vld [vmem:[%s280] sm:$0x1]
    %v282 = vpack.c.bf16 %v270, %v270
    %v284 = vperm.slane %v281, 0
    %v294 = vunpack.c.l.b16 %v272
    %v295 = vunpack.c.l.b16 %v273
    %v296 = vunpack.c.l.b16 %v274
    %v297 = vunpack.c.l.b16 %v275
    %v298 = vunpack.c.l.b16 %v276
    %v299 = vunpack.c.l.b16 %v277
    %v300 = vunpack.c.l.b16 %v278
    %v301 = vunpack.c.l.b16 %v279
    %v302 = vpack.c.b16 %v295, %v294
    %v303 = vpack.c.b16 %v297, %v296
    %v304 = vpack.c.b16 %v299, %v298
    %v305 = vpack.c.b16 %v301, %v300
    %v311 = vsel %vm139, %v282, 0
    %313 = vmatpush.bf16.msra.mxu0 0
    %314 = vmatpush.bf16.msra.mxu0 0
    %315 = vmatpush.bf16.msra.mxu0 0
    %316 = vmatpush.bf16.msra.mxu0 0
    %317 = vmatpush.bf16.msra.mxu0 %v305
    %318 = vmatpush.bf16.msra.mxu0 %v304
    %319 = vmatpush.bf16.msra.mxu0 %v303
    %320 = vmatpush.bf16.msra.mxu0 %v302
    %321 = vmatmul.bf16.gmra.mxu0 %v311
    %v322 = vpop.f32.mrf.mxu0
    %v323 = vadd.f32 %v284, %v322
    %v324 = vpop.f32.mrf.mxu0
    %325 = vdwg.mxu0
    %v326 = vmax.f32 %v323, 0.0
    %s327 = scalar_lea.vmem [#allocation5], 160
    %v328 = vld [vmem:[%s327] sm:$0xf]
    %v329 = vld [vmem:[%s327 + $0x4] sm:$0xf]
    %v330 = vld [vmem:[%s327 + $0x8] sm:$0xf]
    %v331 = vld [vmem:[%s327 + $0xc] sm:$0xf]
    %v332 = vld [vmem:[%s327 + $0x10] sm:$0xf]
    %v333 = vld [vmem:[%s327 + $0x14] sm:$0xf]
    %v334 = vld [vmem:[%s327 + $0x18] sm:$0xf]
    %v335 = vld [vmem:[%s327 + $0x1c] sm:$0xf]
    %s336 = scalar_lea.vmem [#allocation7], 5
    %v337 = vld [vmem:[%s336] sm:$0x1]
    %v338 = vpack.c.bf16 %v326, %v326
    %v340 = vperm.slane %v337, 0
    %v350 = vunpack.c.l.b16 %v328
    %v351 = vunpack.c.l.b16 %v329
    %v352 = vunpack.c.l.b16 %v330
    %v353 = vunpack.c.l.b16 %v331
    %v354 = vunpack.c.l.b16 %v332
    %v355 = vunpack.c.l.b16 %v333
    %v356 = vunpack.c.l.b16 %v334
    %v357 = vunpack.c.l.b16 %v335
    %v358 = vpack.c.b16 %v351, %v350
    %v359 = vpack.c.b16 %v353, %v352
    %v360 = vpack.c.b16 %v355, %v354
    %v361 = vpack.c.b16 %v357, %v356
    %v367 = vsel %vm139, %v338, 0
    %369 = vmatpush.bf16.msra.mxu0 0
    %370 = vmatpush.bf16.msra.mxu0 0
    %371 = vmatpush.bf16.msra.mxu0 0
    %372 = vmatpush.bf16.msra.mxu0 0
    %373 = vmatpush.bf16.msra.mxu0 %v361
    %374 = vmatpush.bf16.msra.mxu0 %v360
    %375 = vmatpush.bf16.msra.mxu0 %v359
    %376 = vmatpush.bf16.msra.mxu0 %v358
    %377 = vmatmul.bf16.gmra.mxu0 %v367
    %v378 = vpop.f32.mrf.mxu0
    %v379 = vadd.f32 %v340, %v378
    %v380 = vpop.f32.mrf.mxu0
    %381 = vdwg.mxu0
    %v382 = vadd.f32 %v379, %v326
    %v383 = vmax.f32 %v382, 0.0
    %s384 = scalar_lea.vmem [#allocation5], 192
    %v385 = vld [vmem:[%s384] sm:$0xf]
    %v386 = vld [vmem:[%s384 + $0x4] sm:$0xf]
    %v387 = vld [vmem:[%s384 + $0x8] sm:$0xf]
    %v388 = vld [vmem:[%s384 + $0xc] sm:$0xf]
    %v389 = vld [vmem:[%s384 + $0x10] sm:$0xf]
    %v390 = vld [vmem:[%s384 + $0x14] sm:$0xf]
    %v391 = vld [vmem:[%s384 + $0x18] sm:$0xf]
    %v392 = vld [vmem:[%s384 + $0x1c] sm:$0xf]
    %s393 = scalar_lea.vmem [#allocation7], 6
    %v394 = vld [vmem:[%s393] sm:$0x1]
    %v395 = vpack.c.bf16 %v383, %v383
    %v397 = vperm.slane %v394, 0
    %v407 = vunpack.c.l.b16 %v385
    %v408 = vunpack.c.l.b16 %v386
    %v409 = vunpack.c.l.b16 %v387
    %v410 = vunpack.c.l.b16 %v388
    %v411 = vunpack.c.l.b16 %v389
    %v412 = vunpack.c.l.b16 %v390
    %v413 = vunpack.c.l.b16 %v391
    %v414 = vunpack.c.l.b16 %v392
    %v415 = vpack.c.b16 %v408, %v407
    %v416 = vpack.c.b16 %v410, %v409
    %v417 = vpack.c.b16 %v412, %v411
    %v418 = vpack.c.b16 %v414, %v413
    %v424 = vsel %vm139, %v395, 0
    %426 = vmatpush.bf16.msra.mxu0 0
    %427 = vmatpush.bf16.msra.mxu0 0
    %428 = vmatpush.bf16.msra.mxu0 0
    %429 = vmatpush.bf16.msra.mxu0 0
    %430 = vmatpush.bf16.msra.mxu0 %v418
    %431 = vmatpush.bf16.msra.mxu0 %v417
    %432 = vmatpush.bf16.msra.mxu0 %v416
    %433 = vmatpush.bf16.msra.mxu0 %v415
    %434 = vmatmul.bf16.gmra.mxu0 %v424
    %v435 = vpop.f32.mrf.mxu0
    %v436 = vadd.f32 %v397, %v435
    %v437 = vpop.f32.mrf.mxu0
    %438 = vdwg.mxu0
    %vm439 = vcmask 130048
    %440 = vst.msk [vmem:[#allocation8] sm:$0xff] %vm439, %v436
    // Predicated region
    $region26: #{tpu_custom_call.1} parent=1 // pred_check
      _
    $region27: #{tpu_custom_call.1} parent=1 // pred_check_branch
      %442 = sbr.rel (0) target = $region29
    $region28: #{tpu_custom_call.1} parent=1 // pred_region
      %444 = vsyncadd [#allocation4], 0
      %s446 = sshll.u32 [#allocation8], 4
      %s447 = int_to_ptr.vmem [resolvable:$true] %s446
      %s448 = sshll.u32 %s3, 4
      %s449 = int_to_ptr.hbm [resolvable:$true] %s448
      %451 = dma.vmem_to_hbm [thread:$0]  %s447, 128, %s449, [#allocation4]
    $region29: #{tpu_custom_call.1} parent=1 // pred_fallthru
      _
    // Predicated region
    $region30: #{tpu_custom_call.1} parent=1 // pred_check
      _
    $region31: #{tpu_custom_call.1} parent=1 // pred_check_branch
      %453 = sbr.rel (0) target = $region33
    $region32: #{tpu_custom_call.1} parent=1 // pred_region
      %455 = dma.done [#allocation4], 128
    $region33: #{tpu_custom_call.1} parent=1 // pred_fallthru
      _
    %456 = vsyncpa [#allocation3], 1
    %457 = vsyncpa [#allocation6], 1
    %458 = vsyncpa [#allocation4], 1

</llo_original>
